<compile_context>
chip_gen: v7x
topology: tpu7x:2x2x1
jax: 0.10.0
libtpu: 0.0.40
codegen_flags: <defaults>
</compile_context>

<pallas_src>
import functools

import jax
import jax.numpy as jnp
from jax.experimental import pallas as pl
from jax.experimental.pallas import tpu as pltpu


def _round_up(x, m):
    return pl.cdiv(x, m) * m


def _vq_kernel(z_ref, w_ref, hwsq_ref, zq_ref, idx_ref, hist_ref,
               *, hw, tile_hw, use_bf16):
    z = z_ref[...]            # (C, T)       f32, NCHW-native tile
    w = w_ref[...]            # (K_pad, C)   f32 codebook (padded rows are 0)
    half_wsq = hwsq_ref[...]  # (K_pad, 1)   f32 0.5*||w||^2 (padded rows = +inf)
    k_pad = w.shape[0]
    t = z.shape[1]

    # argmin_k ||z - w_k||^2  ==  argmin_k (0.5*||w_k||^2 - w_k . z)
    # (the ||z||^2 term is a per-column constant; the 2x scale is folded).
    if use_bf16:
        zw = jnp.dot(w.astype(jnp.bfloat16), z.astype(jnp.bfloat16),
                     preferred_element_type=jnp.float32)          # (K_pad, T)
    else:
        zw = jnp.dot(w, z, preferred_element_type=jnp.float32)    # (K_pad, T)
    d = half_wsq - zw                                             # (K_pad, T)

    # argmin over the codebook (sublane) axis, first occurrence like torch.
    min_d = jnp.min(d, axis=0, keepdims=True)                     # (1, T)
    row = jax.lax.broadcasted_iota(jnp.int32, d.shape, 0)         # (K_pad, T)
    idx = jnp.min(jnp.where(d <= min_d, row, k_pad), axis=0)      # (T,) int32

    # One-hot selection; row gather as a transposed-LHS MXU matmul
    # (exact: 1.0 * w_k + 0s; no separate w^T input / no XLU transpose).
    one_hot = (row == idx[None, :]).astype(jnp.float32)           # (K_pad, T)
    z_q = jax.lax.dot_general(w, one_hot, (((0,), (0,)), ((), ())),
                              preferred_element_type=jnp.float32)  # (C, T)

    zq_ref[...] = z_q
    idx_ref[...] = idx[None, :]

    # Codebook-usage histogram for perplexity, computed on the (idle) MXU as
    # one_hot @ vec -> (K_pad, 1).  vec masks H*W-padding lanes when present
    # (static decision; the demo shapes need no padding).
    if hw % tile_hw != 0:
        sub = jax.lax.broadcasted_iota(jnp.int32, (t, 1), 0)
        vec = ((pl.program_id(1) * tile_hw + sub) < hw).astype(jnp.float32)
    else:
        vec = jnp.ones((t, 1), jnp.float32)
    hist_ref[...] = jnp.dot(one_hot, vec, preferred_element_type=jnp.float32)


def _vq_pallas(z3, weight, *, tile_hw=1024, use_bf16=False):
    """z3: (B, C, H*W) f32 (NCHW-flattened), weight: (K, C) f32.

    Returns (z_q3 (B, C, H*W) f32, idx (B, 1, H*W) int32, counts (K,) f32).
    """
    b, c, hw = z3.shape
    k = weight.shape[0]

    # Lane-align the codebook axis; padded rows can never win the argmin.
    k_pad = _round_up(k, 128)
    half_wsq = 0.5 * jnp.sum(weight * weight, axis=1, keepdims=True)  # (K, 1)
    if k_pad != k:
        weight = jnp.pad(weight, ((0, k_pad - k), (0, 0)))
        half_wsq = jnp.pad(half_wsq, ((0, k_pad - k), (0, 0)),
                           constant_values=jnp.inf)

    # Tile the spatial axis; pad only when required (demo needs none).
    tile_hw = _round_up(min(tile_hw, hw), 128)
    hw_pad = _round_up(hw, tile_hw)
    if hw_pad != hw:
        z3 = jnp.pad(z3, ((0, 0), (0, 0), (0, hw_pad - hw)))
    n_tiles = hw_pad // tile_hw

    kernel = functools.partial(_vq_kernel, hw=hw, tile_hw=tile_hw,
                               use_bf16=use_bf16)

    z_q3, idx3, hist = pl.pallas_call(
        kernel,
        out_shape=(
            jax.ShapeDtypeStruct((b, c, hw_pad), jnp.float32),
            jax.ShapeDtypeStruct((b, 1, hw_pad), jnp.int32),
            jax.ShapeDtypeStruct((b, n_tiles, k_pad, 1), jnp.float32),
        ),
        grid_spec=pltpu.PrefetchScalarGridSpec(
            num_scalar_prefetch=0,
            grid=(b, n_tiles),
            in_specs=[
                pl.BlockSpec((None, c, tile_hw), lambda bi, j: (bi, 0, j)),
                pl.BlockSpec((k_pad, c), lambda bi, j: (0, 0)),
                pl.BlockSpec((k_pad, 1), lambda bi, j: (0, 0)),
            ],
            out_specs=[
                pl.BlockSpec((None, c, tile_hw), lambda bi, j: (bi, 0, j)),
                pl.BlockSpec((None, 1, tile_hw), lambda bi, j: (bi, 0, j)),
                pl.BlockSpec((None, None, k_pad, 1),
                             lambda bi, j: (bi, j, 0, 0)),
            ],
        ),
        compiler_params=pltpu.CompilerParams(
            dimension_semantics=("parallel", "parallel"),
            vmem_limit_bytes=48 * 1024 * 1024),
    )(z3, weight, half_wsq)

    counts = jnp.sum(hist, axis=(0, 1, 3))[:k]                     # (K,)
    return z_q3[:, :, :hw], idx3[:, :, :hw], counts


@functools.partial(jax.jit, static_argnames=("beta",))
def ema_vector_quantizer_forward(z, weight, beta=0.25):
    """Eval-mode forward of EMAVectorQuantizer.

    z:      (B, C, H, W) float32 (NCHW, like the PyTorch module)
    weight: (K, C) float32       (EmbeddingEMA codebook)
    returns (z_q_nchw, loss, (perplexity, encodings, encoding_indices))
    """
    b, c, h, w = z.shape
    n = b * h * w
    k = weight.shape[0]
    z = z.astype(jnp.float32)
    weight = weight.astype(jnp.float32)

    # NCHW -> (B, C, H*W) is a free reshape (no transpose); the kernel works
    # directly in this channels-as-sublanes layout.
    z3 = z.reshape(b, c, h * w)
    z_q3, idx3, counts = _vq_pallas(z3, weight)

    z_q = z_q3.reshape(b, c, h, w)
    # idx3 flatten order is (b, h, w) — identical to the NHWC-flatten order the
    # PyTorch module uses for encoding_indices.
    encoding_indices = idx3.reshape(-1)

    # Perplexity from the in-kernel usage histogram (no (N, K) one-hot write).
    avg_probs = counts / n
    perplexity = jnp.exp(-jnp.sum(avg_probs * jnp.log(avg_probs + 1e-10)))

    # One-hot encodings only for API parity; built outside the kernel and
    # dead-code-eliminated by XLA if unused downstream.
    encodings = jax.nn.one_hot(encoding_indices, k, dtype=jnp.float32)

    # Commitment loss: beta * mse(z_q.detach(), z)  (layout-invariant).
    loss = beta * jnp.mean((jax.lax.stop_gradient(z_q) - z) ** 2)

    # Straight-through estimator (numerically equal to z_q).
    z_q = z + jax.lax.stop_gradient(z_q - z)
    return z_q, loss, (perplexity, encodings, encoding_indices)


def _reference(z, weight, beta):
    """Plain-JAX reference (mirrors the PyTorch forward) for sanity checks."""
    b, c, h, w = z.shape
    z_nhwc = jnp.transpose(z, (0, 2, 3, 1))
    z_flat = z_nhwc.reshape(-1, c)
    d = (jnp.sum(z_flat**2, axis=1, keepdims=True)
         + jnp.sum(weight**2, axis=1)[None, :]
         - 2.0 * z_flat @ weight.T)
    idx = jnp.argmin(d, axis=1)
    z_q = weight[idx].reshape(b, h, w, c)
    enc = jax.nn.one_hot(idx, weight.shape[0], dtype=jnp.float32)
    avg = jnp.mean(enc, axis=0)
    ppl = jnp.exp(-jnp.sum(avg * jnp.log(avg + 1e-10)))
    loss = beta * jnp.mean((z_q - z_nhwc) ** 2)
    return jnp.transpose(z_q, (0, 3, 1, 2)), loss, ppl, idx


if __name__ == "__main__":
    key = jax.random.PRNGKey(0)
    k_z, k_w = jax.random.split(key)

    # Small shapes consistent with the module: embedding_dim=C=4, n_embed=32.
    B, C, H, W = 2, 4, 16, 16
    n_embed = 32
    beta = 0.25

    z = jax.random.normal(k_z, (B, C, H, W), dtype=jnp.float32)
    # EmbeddingEMA.weight = torch.randn(num_tokens, codebook_dim)
    codebook = jax.random.normal(k_w, (n_embed, C), dtype=jnp.float32)

    z_q, loss, (perplexity, encodings, indices) = ema_vector_quantizer_forward(
        z, codebook, beta=beta)
    jax.block_until_ready((z_q, loss, perplexity, encodings, indices))

    # sanity check vs plain-JAX reference
    zq_ref, loss_ref, ppl_ref, idx_ref = _reference(z, codebook, beta)
    assert z_q.shape == (B, C, H, W)
    assert encodings.shape == (B * H * W, n_embed)
    assert indices.shape == (B * H * W,)
    assert jnp.all(indices == idx_ref)
    assert jnp.allclose(z_q, zq_ref, atol=1e-5)
    assert jnp.allclose(loss, loss_ref, atol=1e-6)
    assert jnp.allclose(perplexity, ppl_ref, atol=1e-4)

    print("KERNEL_OK")
</pallas_src>

<mosaic_0001>
module attributes {stable_mosaic.version = 11 : i64} {
  func.func @_vq_kernel(%arg0: i32, %arg1: i32, %arg2: memref<1x4x256xf32, #tpu.memory_space<vmem>>, %arg3: memref<128x4xf32, #tpu.memory_space<vmem>>, %arg4: memref<128x1xf32, #tpu.memory_space<vmem>>, %arg5: memref<1x4x256xf32, #tpu.memory_space<vmem>>, %arg6: memref<1x1x256xi32, #tpu.memory_space<vmem>>, %arg7: memref<1x1x128x1xf32, #tpu.memory_space<vmem>>) attributes {dimension_semantics = [#tpu.dimension_semantics<parallel>, #tpu.dimension_semantics<parallel>], iteration_bounds = array<i64: 2, 1>, scalar_prefetch = 0 : i64, scratch_operands = 0 : i64, tpu.core_type = #tpu.core_type<tc>, window_params = [{transform_indices = @transform_0, window_bounds = array<i64: 1, 4, 256>}, {pipeline_mode = #tpu.pipeline_mode<synchronous>, transform_indices = @transform_1, window_bounds = array<i64: 128, 4>}, {pipeline_mode = #tpu.pipeline_mode<synchronous>, transform_indices = @transform_2, window_bounds = array<i64: 128, 1>}, {transform_indices = @transform_3, window_bounds = array<i64: 1, 4, 256>}, {transform_indices = @transform_4, window_bounds = array<i64: 1, 1, 256>}, {transform_indices = @transform_5, window_bounds = array<i64: 1, 1, 128, 1>}]} {
    %c0 = arith.constant 0 : index
    %c0_0 = arith.constant 0 : index
    %c0_1 = arith.constant 0 : index
    %0 = vector.load %arg2[%c0, %c0_0, %c0_1] : memref<1x4x256xf32, #tpu.memory_space<vmem>>, vector<1x4x256xf32>
    %1 = vector.shape_cast %0 : vector<1x4x256xf32> to vector<4x256xf32>
    %c0_2 = arith.constant 0 : index
    %c0_3 = arith.constant 0 : index
    %2 = vector.load %arg3[%c0_2, %c0_3] : memref<128x4xf32, #tpu.memory_space<vmem>>, vector<128x4xf32>
    %c0_4 = arith.constant 0 : index
    %c0_5 = arith.constant 0 : index
    %3 = vector.load %arg4[%c0_4, %c0_5] : memref<128x1xf32, #tpu.memory_space<vmem>>, vector<128x1xf32>
    %cst = arith.constant dense<0.000000e+00> : vector<128x256xf32>
    %4 = tpu.matmul %2, %1, %cst {dimension_numbers = #tpu.dot_dimension_numbers<[1], [0], [0], [1], [0, 0, 1, 1], [], []>} : vector<128x4xf32>, vector<4x256xf32>, vector<128x256xf32> -> vector<128x256xf32>
    %5 = vector.broadcast %3 : vector<128x1xf32> to vector<128x256xf32>
    %6 = arith.subf %5, %4 : vector<128x256xf32>
    %cst_6 = arith.constant dense<0x7F800000> : vector<256xf32>
    %7 = vector.multi_reduction <minimumf>, %6, %cst_6 [0] : vector<128x256xf32> to vector<256xf32>
    %8 = vector.shape_cast %7 : vector<256xf32> to vector<1x256xf32>
    %9 = tpu.iota {dimensions = array<i32: 0>} : vector<128x256xi32>
    %10 = vector.broadcast %8 : vector<1x256xf32> to vector<128x256xf32>
    %11 = arith.cmpf ole, %6, %10 : vector<128x256xf32>
    %c128_i32 = arith.constant 128 : i32
    %12 = vector.broadcast %c128_i32 : i32 to vector<128x256xi32>
    %13 = arith.select %11, %9, %12 : vector<128x256xi1>, vector<128x256xi32>
    %cst_7 = arith.constant dense<2147483647> : vector<256xi32>
    %14 = vector.multi_reduction <minsi>, %13, %cst_7 [0] : vector<128x256xi32> to vector<256xi32>
    %15 = vector.shape_cast %14 : vector<256xi32> to vector<1x256xi32>
    %16 = vector.broadcast %15 : vector<1x256xi32> to vector<128x256xi32>
    %17 = arith.cmpi eq, %9, %16 : vector<128x256xi32>
    %18 = arith.extui %17 : vector<128x256xi1> to vector<128x256xi32>
    %19 = arith.sitofp %18 : vector<128x256xi32> to vector<128x256xf32>
    %cst_8 = arith.constant dense<0.000000e+00> : vector<4x256xf32>
    %20 = tpu.matmul %2, %19, %cst_8 {dimension_numbers = #tpu.dot_dimension_numbers<[0], [0], [1], [1], [0, 1, 1, 1], [], []>} : vector<128x4xf32>, vector<128x256xf32>, vector<4x256xf32> -> vector<4x256xf32>
    %c0_9 = arith.constant 0 : index
    %c0_10 = arith.constant 0 : index
    %c0_11 = arith.constant 0 : index
    %21 = vector.load %arg5[%c0_9, %c0_10, %c0_11] : memref<1x4x256xf32, #tpu.memory_space<vmem>>, vector<1x4x256xf32>
    %22 = vector.shape_cast %21 : vector<1x4x256xf32> to vector<4x256xf32>
    %23 = vector.shape_cast %20 : vector<4x256xf32> to vector<1x4x256xf32>
    tpu.vector_store %arg5[%c0_9, %c0_10, %c0_11], %23 {strides = array<i32>} : memref<1x4x256xf32, #tpu.memory_space<vmem>>, vector<1x4x256xf32>,
    %24 = vector.shape_cast %14 : vector<256xi32> to vector<1x256xi32>
    %c0_12 = arith.constant 0 : index
    %c0_13 = arith.constant 0 : index
    %c0_14 = arith.constant 0 : index
    %25 = vector.load %arg6[%c0_12, %c0_13, %c0_14] : memref<1x1x256xi32, #tpu.memory_space<vmem>>, vector<1x1x256xi32>
    %26 = vector.shape_cast %25 : vector<1x1x256xi32> to vector<1x256xi32>
    %27 = vector.shape_cast %24 : vector<1x256xi32> to vector<1x1x256xi32>
    tpu.vector_store %arg6[%c0_12, %c0_13, %c0_14], %27 {strides = array<i32>} : memref<1x1x256xi32, #tpu.memory_space<vmem>>, vector<1x1x256xi32>,
    %cst_15 = arith.constant 1.000000e+00 : f32
    %28 = vector.broadcast %cst_15 : f32 to vector<256x1xf32>
    %cst_16 = arith.constant dense<0.000000e+00> : vector<128x1xf32>
    %29 = tpu.matmul %19, %28, %cst_16 {dimension_numbers = #tpu.dot_dimension_numbers<[1], [0], [0], [1], [0, 0, 1, 1], [], []>} : vector<128x256xf32>, vector<256x1xf32>, vector<128x1xf32> -> vector<128x1xf32>
    %c0_17 = arith.constant 0 : index
    %c0_18 = arith.constant 0 : index
    %c0_19 = arith.constant 0 : index
    %c0_20 = arith.constant 0 : index
    %30 = vector.load %arg7[%c0_17, %c0_18, %c0_19, %c0_20] : memref<1x1x128x1xf32, #tpu.memory_space<vmem>>, vector<1x1x128x1xf32>
    %31 = vector.shape_cast %30 : vector<1x1x128x1xf32> to vector<128x1xf32>
    %32 = vector.shape_cast %29 : vector<128x1xf32> to vector<1x1x128x1xf32>
    tpu.vector_store %arg7[%c0_17, %c0_18, %c0_19, %c0_20], %32 {strides = array<i32>} : memref<1x1x128x1xf32, #tpu.memory_space<vmem>>, vector<1x1x128x1xf32>,
    return
  }
  func.func @transform_0(%arg0: i32, %arg1: i32) -> (i32, i32, i32) {
    %c0_i32 = arith.constant 0 : i32
    %c0_i32_0 = arith.constant 0 : i32
    return %arg0, %c0_i32, %arg1 : i32, i32, i32
  }
  func.func @transform_1(%arg0: i32, %arg1: i32) -> (i32, i32) {
    %c0_i32 = arith.constant 0 : i32
    %c0_i32_0 = arith.constant 0 : i32
    %c0_i32_1 = arith.constant 0 : i32
    return %c0_i32, %c0_i32_0 : i32, i32
  }
  func.func @transform_2(%arg0: i32, %arg1: i32) -> (i32, i32) {
    %c0_i32 = arith.constant 0 : i32
    %c0_i32_0 = arith.constant 0 : i32
    %c0_i32_1 = arith.constant 0 : i32
    return %c0_i32, %c0_i32_0 : i32, i32
  }
  func.func @transform_3(%arg0: i32, %arg1: i32) -> (i32, i32, i32) {
    %c0_i32 = arith.constant 0 : i32
    %c0_i32_0 = arith.constant 0 : i32
    return %arg0, %c0_i32, %arg1 : i32, i32, i32
  }
  func.func @transform_4(%arg0: i32, %arg1: i32) -> (i32, i32, i32) {
    %c0_i32 = arith.constant 0 : i32
    %c0_i32_0 = arith.constant 0 : i32
    return %arg0, %c0_i32, %arg1 : i32, i32, i32
  }
  func.func @transform_5(%arg0: i32, %arg1: i32) -> (i32, i32, i32, i32) {
    %c0_i32 = arith.constant 0 : i32
    %c0_i32_0 = arith.constant 0 : i32
    %c0_i32_1 = arith.constant 0 : i32
    return %arg0, %arg1, %c0_i32, %c0_i32_0 : i32, i32, i32, i32
  }
}

</mosaic_0001>

<llo_original>
// kernel: ema_vector_quantizer_forward.1
$region0: #{ema_vector_quantizer_forward.1}
  #allocation0 [shape = 'u32[]', space=smem, size = 0x4, offset = 0x4, fixed_abs, tag = 'smem constant byte address 0x4 - core index']
  #allocation1 [shape = 'u32[144,128]{1,0:T(1,128)}', space=vmem, size = 0x12000, scoped, tag = 'internal scratch']
  %s0 = inlined_call_operand.vmem [shape: f32[2,4,256], index: 0, kind: input, shape index: {}]
  %s1 = inlined_call_operand.vmem [shape: f32[128,4], index: 1, kind: input, shape index: {}]
  %s2 = inlined_call_operand.vmem [shape: f32[128,1], index: 2, kind: input, shape index: {}]
  %s3 = inlined_call_operand.vmem [shape: f32[2,4,256], index: 3, kind: output, shape index: {0}]
  %s4 = inlined_call_operand.vmem [shape: s32[2,1,256], index: 4, kind: output, shape index: {1}]
  %s5 = inlined_call_operand.vmem [shape: f32[2,1,128,1], index: 5, kind: output, shape index: {2}]
  %6 = xla_tuple %s3, %s4, %s5
  %s7 = sld [smem:[#allocation0]]
  $region61: #{ema_vector_quantizer_forward.1} parent=0
    _
  %s9 = ssub.s32 1, %s7
  %s10 = scalar_select 0, %s9, %s7
  loop: start=0, step=1, limit=4
  $region2: #{ema_vector_quantizer_forward.1} parent=0 // loop_pre_header
    _
  $region3: #{ema_vector_quantizer_forward.1} parent=0 // loop_header
    %s12 = sphi 0, %s16
    %p13 = scmp.ge.s32.totalorder %s12, 4
    %s19 = sphi 0, %s31
    %s20 = sphi 0, %s27
    %s21 = sphi 0, %s19
    %s22 = sphi 0, %s20
    %s23 = sphi 0, %s21
    %s24 = sphi 0, %s22
    %s36 = sphi 0, %s38
    %s39 = sphi 0, %s36
    %s40 = sphi 0, %s39
    %s56 = sphi 0, %s40
    %s60 = sphi 0, %s60
    %s62 = sphi 0, %s60
    %s63 = sphi 0, %s62
    %s77 = sphi 0, %s63
    %s81 = sphi 0, %s81
    %s83 = sphi 0, %s81
    %s84 = sphi 0, %s83
    %s98 = sphi 0, %s84
    %s106 = sphi 0, %s108
    %s109 = sphi 0, %s106
    %s110 = sphi 0, %s109
    %s126 = sphi 0, %s110
    %s134 = sphi 0, %s136
    %s137 = sphi 0, %s134
    %s138 = sphi 0, %s137
    %s154 = sphi 0, %s138
    %s162 = sphi 0, %s164
    %s165 = sphi 0, %s162
    %s166 = sphi 0, %s165
    %s182 = sphi 0, %s166
  $region4: #{ema_vector_quantizer_forward.1} parent=0 // loop_header_branch
    %15 = sbr.rel (%p13) target = $region8
  $region5: #{ema_vector_quantizer_forward.1} parent=0 // loop_body
    %s17 = ssub.s32 %s12, 1
    %s18 = ssub.s32 %s12, 2
    %s25 = sadd.s32 1, %s20
    %p26 = scmp.ge.s32.totalorder %s25, 1
    %s27 = scalar_select %p26, 0, %s25
    %s28 = sadd.s32 1, %s19
    %s29 = scalar_select %p26, %s28, %s19
    %p30 = scmp.ge.s32.totalorder %s29, 2
    %s31 = scalar_select %p30, 0, %s29
    %s32 = ssub.s32 %s19, %s31
    %s33 = ssub.s32 %s20, %s27
    %s34 = sor.u32 %s32, %s33
    %p35 = scmp.eq.s32.totalorder %s34, 0
    %s37 = sadd.s32 %s36, 1
    %s38 = scalar_select %p35, %s36, %s37
    %p41 = pneg %p35
    %p42 = scmp.eq.s32.totalorder %s12, 1
    %p43 = por %p41, %p42
    %p44 = scmp.ne.s32.totalorder %s36, %s39
    %p45 = scmp.eq.s32.totalorder %s12, 0
    %p46 = por %p44, %p45
    %p47 = scmp.ne.s32.totalorder %s36, %s39
    %p48 = scmp.eq.s32.totalorder %s17, 1
    %p49 = por %p47, %p48
    %p50 = scmp.ne.s32.totalorder %s39, %s40
    %p51 = scmp.eq.s32.totalorder %s17, 0
    %p52 = por %p50, %p51
    %p53 = scmp.ne.s32.totalorder %s39, %s40
    %p54 = scmp.eq.s32.totalorder %s18, 1
    %p55 = por %p53, %p54
    %p57 = scmp.ne.s32.totalorder %s40, %s56
    %p58 = scmp.eq.s32.totalorder %s18, 0
    %p59 = por %p57, %p58
    %s61 = sadd.s32 %s60, 1
    %p64 = scmp.eq.s32.totalorder %s12, 1
    %p65 = scmp.ne.s32.totalorder %s60, %s62
    %p66 = scmp.eq.s32.totalorder %s12, 0
    %p67 = por %p65, %p66
    %p68 = scmp.ne.s32.totalorder %s60, %s62
    %p69 = scmp.eq.s32.totalorder %s17, 1
    %p70 = por %p68, %p69
    %p71 = scmp.ne.s32.totalorder %s62, %s63
    %p72 = scmp.eq.s32.totalorder %s17, 0
    %p73 = por %p71, %p72
    %p74 = scmp.ne.s32.totalorder %s62, %s63
    %p75 = scmp.eq.s32.totalorder %s18, 1
    %p76 = por %p74, %p75
    %p78 = scmp.ne.s32.totalorder %s63, %s77
    %p79 = scmp.eq.s32.totalorder %s18, 0
    %p80 = por %p78, %p79
    %s82 = sadd.s32 %s81, 1
    %p85 = scmp.eq.s32.totalorder %s12, 1
    %p86 = scmp.ne.s32.totalorder %s81, %s83
    %p87 = scmp.eq.s32.totalorder %s12, 0
    %p88 = por %p86, %p87
    %p89 = scmp.ne.s32.totalorder %s81, %s83
    %p90 = scmp.eq.s32.totalorder %s17, 1
    %p91 = por %p89, %p90
    %p92 = scmp.ne.s32.totalorder %s83, %s84
    %p93 = scmp.eq.s32.totalorder %s17, 0
    %p94 = por %p92, %p93
    %p95 = scmp.ne.s32.totalorder %s83, %s84
    %p96 = scmp.eq.s32.totalorder %s18, 1
    %p97 = por %p95, %p96
    %p99 = scmp.ne.s32.totalorder %s84, %s98
    %p100 = scmp.eq.s32.totalorder %s18, 0
    %p101 = por %p99, %p100
    %s102 = ssub.s32 %s19, %s31
    %s103 = ssub.s32 %s20, %s27
    %s104 = sor.u32 %s102, %s103
    %p105 = scmp.eq.s32.totalorder %s104, 0
    %s107 = sadd.s32 %s106, 1
    %s108 = scalar_select %p105, %s106, %s107
    %p111 = pneg %p105
    %p112 = scmp.eq.s32.totalorder %s12, 1
    %p113 = por %p111, %p112
    %p114 = scmp.ne.s32.totalorder %s106, %s109
    %p115 = scmp.eq.s32.totalorder %s12, 0
    %p116 = por %p114, %p115
    %p117 = scmp.ne.s32.totalorder %s106, %s109
    %p118 = scmp.eq.s32.totalorder %s17, 1
    %p119 = por %p117, %p118
    %p120 = scmp.ne.s32.totalorder %s109, %s110
    %p121 = scmp.eq.s32.totalorder %s17, 0
    %p122 = por %p120, %p121
    %p123 = scmp.ne.s32.totalorder %s109, %s110
    %p124 = scmp.eq.s32.totalorder %s18, 1
    %p125 = por %p123, %p124
    %p127 = scmp.ne.s32.totalorder %s110, %s126
    %p128 = scmp.eq.s32.totalorder %s18, 0
    %p129 = por %p127, %p128
    %s130 = ssub.s32 %s19, %s31
    %s131 = ssub.s32 %s20, %s27
    %s132 = sor.u32 %s130, %s131
    %p133 = scmp.eq.s32.totalorder %s132, 0
    %s135 = sadd.s32 %s134, 1
    %s136 = scalar_select %p133, %s134, %s135
    %p139 = pneg %p133
    %p140 = scmp.eq.s32.totalorder %s12, 1
    %p141 = por %p139, %p140
    %p142 = scmp.ne.s32.totalorder %s134, %s137
    %p143 = scmp.eq.s32.totalorder %s12, 0
    %p144 = por %p142, %p143
    %p145 = scmp.ne.s32.totalorder %s134, %s137
    %p146 = scmp.eq.s32.totalorder %s17, 1
    %p147 = por %p145, %p146
    %p148 = scmp.ne.s32.totalorder %s137, %s138
    %p149 = scmp.eq.s32.totalorder %s17, 0
    %p150 = por %p148, %p149
    %p151 = scmp.ne.s32.totalorder %s137, %s138
    %p152 = scmp.eq.s32.totalorder %s18, 1
    %p153 = por %p151, %p152
    %p155 = scmp.ne.s32.totalorder %s138, %s154
    %p156 = scmp.eq.s32.totalorder %s18, 0
    %p157 = por %p155, %p156
    %s158 = ssub.s32 %s19, %s31
    %s159 = ssub.s32 %s20, %s27
    %s160 = sor.u32 %s158, %s159
    %p161 = scmp.eq.s32.totalorder %s160, 0
    %s163 = sadd.s32 %s162, 1
    %s164 = scalar_select %p161, %s162, %s163
    %p167 = pneg %p161
    %p168 = scmp.eq.s32.totalorder %s12, 1
    %p169 = por %p167, %p168
    %p170 = scmp.ne.s32.totalorder %s162, %s165
    %p171 = scmp.eq.s32.totalorder %s12, 0
    %p172 = por %p170, %p171
    %p173 = scmp.ne.s32.totalorder %s162, %s165
    %p174 = scmp.eq.s32.totalorder %s17, 1
    %p175 = por %p173, %p174
    %p176 = scmp.ne.s32.totalorder %s165, %s166
    %p177 = scmp.eq.s32.totalorder %s17, 0
    %p178 = por %p176, %p177
    %p179 = scmp.ne.s32.totalorder %s165, %s166
    %p180 = scmp.eq.s32.totalorder %s18, 1
    %p181 = por %p179, %p180
    %p183 = scmp.ne.s32.totalorder %s166, %s182
    %p184 = scmp.eq.s32.totalorder %s18, 0
    %p185 = por %p183, %p184
    %p186 = scmp.le.s32.totalorder 1, %s12
    %p187 = scmp.lt.s32.totalorder %s12, 3
    %p188 = pnand %p186, %p187
    %p189 = pneg %p188
    // Predicated region
    $region9: #{ema_vector_quantizer_forward.1} parent=5 // pred_check
      _
    $region10: #{ema_vector_quantizer_forward.1} parent=5 // pred_check_branch
      %191 = sbr.rel (%p188) target = $region12
    $region11: #{ema_vector_quantizer_forward.1} parent=5 // pred_region
      %s192 = ssub.s32 %s12, 1
      // Predicated region
      $region13: #{ema_vector_quantizer_forward.1} parent=11 // pred_check
        %p193 = pneg %p73
      $region14: #{ema_vector_quantizer_forward.1} parent=11 // pred_check_branch
        %195 = sbr.rel (%p193) target = $region16
      $region15: #{ema_vector_quantizer_forward.1} parent=11 // pred_region
        _
      $region16: #{ema_vector_quantizer_forward.1} parent=11 // pred_fallthru
        _
      // Predicated region
      $region17: #{ema_vector_quantizer_forward.1} parent=11 // pred_check
        %p196 = pneg %p94
      $region18: #{ema_vector_quantizer_forward.1} parent=11 // pred_check_branch
        %198 = sbr.rel (%p196) target = $region20
      $region19: #{ema_vector_quantizer_forward.1} parent=11 // pred_region
        _
      $region20: #{ema_vector_quantizer_forward.1} parent=11 // pred_fallthru
        _
    $region12: #{ema_vector_quantizer_forward.1} parent=5 // pred_fallthru
      _
    %p199 = scmp.lt.s32.totalorder %s12, 2
    // Predicated region
    $region21: #{ema_vector_quantizer_forward.1} parent=5 // pred_check
      %p200 = pneg %p199
    $region22: #{ema_vector_quantizer_forward.1} parent=5 // pred_check_branch
      %202 = sbr.rel (%p200) target = $region24
    $region23: #{ema_vector_quantizer_forward.1} parent=5 // pred_region
      // Predicated region
      $region25: #{ema_vector_quantizer_forward.1} parent=23 // pred_check
        %p203 = pneg %p46
      $region26: #{ema_vector_quantizer_forward.1} parent=23 // pred_check_branch
        %205 = sbr.rel (%p203) target = $region28
      $region27: #{ema_vector_quantizer_forward.1} parent=23 // pred_region
        %s206 = smul.u32 2, %s20
        %p207 = scmp.lt.s32.totalorder %s19, 1
        %s208 = scalar_select %p207, %s19, 1
        %p209 = scmp.lt.s32.totalorder %s206, 1
        %s210 = scalar_select %p209, %s206, 1
        %s211 = smul.addr %s208, 2
        %s212 = sadd.s32 %s210, %s211
        %s213 = smul.addr %s212, 4
        %s214 = scalar_lea.vmem %s0, %s213
        %s215 = smul.u32 2, %s20
      $region28: #{ema_vector_quantizer_forward.1} parent=23 // pred_fallthru
        _
    $region24: #{ema_vector_quantizer_forward.1} parent=5 // pred_fallthru
      _
    %p216 = scmp.le.s32.totalorder 1, %s12
    %p217 = scmp.lt.s32.totalorder %s12, 3
    %p218 = pnand %p216, %p217
    %p219 = pneg %p218
    // Predicated region
    $region29: #{ema_vector_quantizer_forward.1} parent=5 // pred_check
      _
    $region30: #{ema_vector_quantizer_forward.1} parent=5 // pred_check_branch
      %221 = sbr.rel (%p218) target = $region32
    $region31: #{ema_vector_quantizer_forward.1} parent=5 // pred_region
      %s222 = ssub.s32 %s12, 1
      %s223 = smul.u32 2, %s22
      %p224 = scmp.lt.s32.totalorder %s21, 1
      %s225 = scalar_select %p224, %s21, 1
      %p226 = scmp.lt.s32.totalorder %s223, 1
      %s227 = scalar_select %p226, %s223, 1
      %s228 = smul.addr %s225, 2
      %s229 = sadd.s32 %s227, %s228
      %s230 = smul.addr %s229, 4
      %s231 = scalar_lea.vmem %s0, %s230
      %p232 = pneg %p52
      %p233 = pneg %p49
      %p234 = pneg %p73
      %p235 = pneg %p70
      %p236 = pneg %p94
      %p237 = pneg %p91
      %p238 = pneg %p122
      %p239 = pneg %p119
      %s240 = smul.u32 2, %s22
      %p241 = scmp.lt.s32.totalorder %s21, 1
      %s242 = scalar_select %p241, %s21, 1
      %p243 = scmp.lt.s32.totalorder %s240, 1
      %s244 = scalar_select %p243, %s240, 1
      %s245 = smul.addr %s242, 2
      %s246 = sadd.s32 %s244, %s245
      %s247 = smul.addr %s246, 4
      %s248 = scalar_lea.vmem %s3, %s247
      %p249 = pneg %p150
      %p250 = pneg %p147
      %s251 = smul.u32 2, %s22
      %p252 = scmp.lt.s32.totalorder %s21, 1
      %s253 = scalar_select %p252, %s21, 1
      %p254 = scmp.lt.s32.totalorder %s251, 1
      %s255 = scalar_select %p254, %s251, 1
      %s256 = smul.addr %s253, 2
      %s257 = sadd.s32 %s255, %s256
      %s258 = scalar_lea.vmem %s4, %s257
      %p259 = pneg %p178
      %p260 = pneg %p175
      %p261 = scmp.lt.s32.totalorder %s21, 1
      %s262 = scalar_select %p261, %s21, 1
      %p263 = scmp.lt.s32.totalorder %s22, 0
      %s264 = scalar_select %p263, %s22, 0
      %s265 = smul.addr %s264, 16
      %s266 = smul.addr %s262, 16
      %s267 = sadd.s32 %s265, %s266
      %s268 = smul.addr %s267, 8
      %s269 = scalar_lea.vmem %s5, %s268
      %s270 = smul.u32 2, %s22
      %p271 = scmp.lt.s32.totalorder %s21, 1
      %s272 = scalar_select %p271, %s21, 1
      %p273 = scmp.lt.s32.totalorder %s270, 1
      %s274 = scalar_select %p273, %s270, 1
      %s275 = smul.addr %s272, 2
      %s276 = sadd.s32 %s274, %s275
      %s277 = smul.addr %s276, 4
      %s278 = scalar_lea.vmem %s0, %s277
      %s279 = smul.u32 2, %s22
      %s280 = smul.u32 2, %s22
      %p281 = scmp.lt.s32.totalorder %s21, 1
      %s282 = scalar_select %p281, %s21, 1
      %p283 = scmp.lt.s32.totalorder %s280, 1
      %s284 = scalar_select %p283, %s280, 1
      %s285 = smul.addr %s282, 2
      %s286 = sadd.s32 %s284, %s285
      %s287 = smul.addr %s286, 4
      %s288 = scalar_lea.vmem %s3, %s287
      %s289 = smul.u32 2, %s22
      %s290 = smul.u32 2, %s22
      %p291 = scmp.lt.s32.totalorder %s21, 1
      %s292 = scalar_select %p291, %s21, 1
      %p293 = scmp.lt.s32.totalorder %s290, 1
      %s294 = scalar_select %p293, %s290, 1
      %s295 = smul.addr %s292, 2
      %s296 = sadd.s32 %s294, %s295
      %s297 = scalar_lea.vmem %s4, %s296
      %s298 = smul.u32 2, %s22
      %p299 = scmp.lt.s32.totalorder %s21, 1
      %s300 = scalar_select %p299, %s21, 1
      %p301 = scmp.lt.s32.totalorder %s22, 0
      %s302 = scalar_select %p301, %s22, 0
      %s303 = smul.addr %s302, 16
      %s304 = smul.addr %s300, 16
      %s305 = sadd.s32 %s303, %s304
      %s306 = smul.addr %s305, 8
      %s307 = scalar_lea.vmem %s5, %s306
      %v308 = vld [vmem:[%s278] sm:$0xff]
      %v309 = vld [vmem:[%s1] sm:$0xff]
      %v310 = vld [vmem:[%s1 + $0x8] sm:$0xff]
      %v311 = vld [vmem:[%s1 + $0x10] sm:$0xff]
      %v312 = vld [vmem:[%s1 + $0x18] sm:$0xff]
      %v313 = vld [vmem:[%s1 + $0x20] sm:$0xff]
      %v314 = vld [vmem:[%s1 + $0x28] sm:$0xff]
      %v315 = vld [vmem:[%s1 + $0x30] sm:$0xff]
      %v316 = vld [vmem:[%s1 + $0x38] sm:$0xff]
      %v317 = vld [vmem:[%s1 + $0x40] sm:$0xff]
      %v318 = vld [vmem:[%s1 + $0x48] sm:$0xff]
      %v319 = vld [vmem:[%s1 + $0x50] sm:$0xff]
      %v320 = vld [vmem:[%s1 + $0x58] sm:$0xff]
      %v321 = vld [vmem:[%s1 + $0x60] sm:$0xff]
      %v322 = vld [vmem:[%s1 + $0x68] sm:$0xff]
      %v323 = vld [vmem:[%s1 + $0x70] sm:$0xff]
      %v324 = vld [vmem:[%s1 + $0x78] sm:$0xff]
      %v325 = vld [vmem:[%s2] sm:$0xff]
      %v326 = vld [vmem:[%s2 + $0x8] sm:$0xff]
      %v327 = vld [vmem:[%s2 + $0x10] sm:$0xff]
      %v328 = vld [vmem:[%s2 + $0x18] sm:$0xff]
      %v329 = vld [vmem:[%s2 + $0x20] sm:$0xff]
      %v330 = vld [vmem:[%s2 + $0x28] sm:$0xff]
      %v331 = vld [vmem:[%s2 + $0x30] sm:$0xff]
      %v332 = vld [vmem:[%s2 + $0x38] sm:$0xff]
      %v333 = vld [vmem:[%s2 + $0x40] sm:$0xff]
      %v334 = vld [vmem:[%s2 + $0x48] sm:$0xff]
      %v335 = vld [vmem:[%s2 + $0x50] sm:$0xff]
      %v336 = vld [vmem:[%s2 + $0x58] sm:$0xff]
      %v337 = vld [vmem:[%s2 + $0x60] sm:$0xff]
      %v338 = vld [vmem:[%s2 + $0x68] sm:$0xff]
      %v339 = vld [vmem:[%s2 + $0x70] sm:$0xff]
      %v340 = vld [vmem:[%s2 + $0x78] sm:$0xff]
      %v342 = vcombine.high %v308, %v308
      %vm343 = vcmask 31744
      %v345 = vsel %vm343, %v309, 0
      %v348 = vsel %vm343, %v310, 0
      %v351 = vsel %vm343, %v311, 0
      %v354 = vsel %vm343, %v312, 0
      %v357 = vsel %vm343, %v313, 0
      %v360 = vsel %vm343, %v314, 0
      %v363 = vsel %vm343, %v315, 0
      %v366 = vsel %vm343, %v316, 0
      %v369 = vsel %vm343, %v317, 0
      %v372 = vsel %vm343, %v318, 0
      %v375 = vsel %vm343, %v319, 0
      %v378 = vsel %vm343, %v320, 0
      %v381 = vsel %vm343, %v321, 0
      %v384 = vsel %vm343, %v322, 0
      %v387 = vsel %vm343, %v323, 0
      %v390 = vsel %vm343, %v324, 0
      %vm392 = vcmask 1043456
      %v393 = vsel %vm392, %v308, 0
      %v395 = vsel %vm392, %v342, 0
      %397 = vmatprep.subr.mxu0 %v395
      %398 = vmatpush1.msra.mxu0 %v393
      %399 = vmatprep.subr.mxu0 0.0
      %400 = vmatpush1.msra.mxu0 0.0
      %401 = vmatprep.subr.mxu0 0.0
      %402 = vmatpush1.msra.mxu0 0.0
      %403 = vmatprep.subr.mxu0 0.0
      %404 = vmatpush1.msra.mxu0 0.0
      %405 = vmatprep.subr.mxu0 0.0
      %406 = vmatpush1.msra.mxu0 0.0
      %407 = vmatprep.subr.mxu0 0.0
      %408 = vmatpush1.msra.mxu0 0.0
      %409 = vmatprep.subr.mxu0 0.0
      %410 = vmatpush1.msra.mxu0 0.0
      %411 = vmatprep.subr.mxu0 0.0
      %412 = vmatpush1.msra.mxu0 0.0
      %413 = vmatprep.subr.mxu0 0.0
      %414 = vmatpush1.msra.mxu0 0.0
      %415 = vmatprep.subr.mxu0 0.0
      %416 = vmatpush1.msra.mxu0 0.0
      %417 = vmatprep.subr.mxu0 0.0
      %418 = vmatpush1.msra.mxu0 0.0
      %419 = vmatprep.subr.mxu0 0.0
      %420 = vmatpush1.msra.mxu0 0.0
      %421 = vmatprep.subr.mxu0 0.0
      %422 = vmatpush1.msra.mxu0 0.0
      %423 = vmatprep.subr.mxu0 0.0
      %424 = vmatpush1.msra.mxu0 0.0
      %425 = vmatprep.subr.mxu0 0.0
      %426 = vmatpush1.msra.mxu0 0.0
      %427 = vmatprep.subr.mxu0 0.0
      %428 = vmatpush1.msra.mxu0 0.0
      %429 = vmatprep.subr.mxu0 0.0
      %430 = vmatpush1.msra.mxu0 0.0
      %431 = vmatprep.subr.mxu0 0.0
      %432 = vmatpush1.msra.mxu0 0.0
      %433 = vmatprep.subr.mxu0 0.0
      %434 = vmatpush1.msra.mxu0 0.0
      %435 = vmatprep.subr.mxu0 0.0
      %436 = vmatpush1.msra.mxu0 0.0
      %437 = vmatprep.subr.mxu0 0.0
      %438 = vmatpush1.msra.mxu0 0.0
      %439 = vmatprep.subr.mxu0 0.0
      %440 = vmatpush1.msra.mxu0 0.0
      %441 = vmatprep.subr.mxu0 0.0
      %442 = vmatpush1.msra.mxu0 0.0
      %443 = vmatprep.subr.mxu0 0.0
      %444 = vmatpush1.msra.mxu0 0.0
      %445 = vmatprep.subr.mxu0 0.0
      %446 = vmatpush1.msra.mxu0 0.0
      %447 = vmatprep.subr.mxu0 0.0
      %448 = vmatpush1.msra.mxu0 0.0
      %449 = vmatprep.subr.mxu0 0.0
      %450 = vmatpush1.msra.mxu0 0.0
      %451 = vmatprep.subr.mxu0 0.0
      %452 = vmatpush1.msra.mxu0 0.0
      %453 = vmatprep.subr.mxu0 0.0
      %454 = vmatpush1.msra.mxu0 0.0
      %455 = vmatprep.subr.mxu0 0.0
      %456 = vmatpush1.msra.mxu0 0.0
      %457 = vmatprep.subr.mxu0 0.0
      %458 = vmatpush1.msra.mxu0 0.0
      %459 = vmatprep.subr.mxu0 0.0
      %460 = vmatpush1.msra.mxu0 0.0
      %461 = vmatprep.mubr.f32.mxu0 0.0
      %462 = vmatmul.mubr.f32.gmra.mrb[0].mxu0 %v345
      %v463 = vpop.f32.mrb[0].mxu0
      %v464 = vadd.f32 0.0, %v463
      %v465 = vpop.f32.mrb[0].mxu0
      %v466 = vadd.f32 0.0, %v465
      %467 = vmatprep.mubr.f32.mxu0 0.0
      %468 = vmatmul.mubr.f32.gmra.mrb[0].mxu0 %v348
      %v469 = vpop.f32.mrb[0].mxu0
      %v470 = vadd.f32 0.0, %v469
      %v471 = vpop.f32.mrb[0].mxu0
      %v472 = vadd.f32 0.0, %v471
      %473 = vmatprep.mubr.f32.mxu0 0.0
      %474 = vmatmul.mubr.f32.gmra.mrb[0].mxu0 %v351
      %v475 = vpop.f32.mrb[0].mxu0
      %v476 = vadd.f32 0.0, %v475
      %v477 = vpop.f32.mrb[0].mxu0
      %v478 = vadd.f32 0.0, %v477
      %479 = vmatprep.mubr.f32.mxu0 0.0
      %480 = vmatmul.mubr.f32.gmra.mrb[0].mxu0 %v354
      %v481 = vpop.f32.mrb[0].mxu0
      %v482 = vadd.f32 0.0, %v481
      %v483 = vpop.f32.mrb[0].mxu0
      %v484 = vadd.f32 0.0, %v483
      %485 = vmatprep.mubr.f32.mxu0 0.0
      %486 = vmatmul.mubr.f32.gmra.mrb[0].mxu0 %v357
      %v487 = vpop.f32.mrb[0].mxu0
      %v488 = vadd.f32 0.0, %v487
      %v489 = vpop.f32.mrb[0].mxu0
      %v490 = vadd.f32 0.0, %v489
      %491 = vmatprep.mubr.f32.mxu0 0.0
      %492 = vmatmul.mubr.f32.gmra.mrb[0].mxu0 %v360
      %v493 = vpop.f32.mrb[0].mxu0
      %v494 = vadd.f32 0.0, %v493
      %v495 = vpop.f32.mrb[0].mxu0
      %v496 = vadd.f32 0.0, %v495
      %497 = vmatprep.mubr.f32.mxu0 0.0
      %498 = vmatmul.mubr.f32.gmra.mrb[0].mxu0 %v363
      %v499 = vpop.f32.mrb[0].mxu0
      %v500 = vadd.f32 0.0, %v499
      %v501 = vpop.f32.mrb[0].mxu0
      %v502 = vadd.f32 0.0, %v501
      %503 = vmatprep.mubr.f32.mxu0 0.0
      %504 = vmatmul.mubr.f32.gmra.mrb[0].mxu0 %v366
      %v505 = vpop.f32.mrb[0].mxu0
      %v506 = vadd.f32 0.0, %v505
      %v507 = vpop.f32.mrb[0].mxu0
      %v508 = vadd.f32 0.0, %v507
      %509 = vmatprep.mubr.f32.mxu0 0.0
      %510 = vmatmul.mubr.f32.gmra.mrb[0].mxu0 %v369
      %v511 = vpop.f32.mrb[0].mxu0
      %v512 = vadd.f32 0.0, %v511
      %v513 = vpop.f32.mrb[0].mxu0
      %v514 = vadd.f32 0.0, %v513
      %515 = vmatprep.mubr.f32.mxu0 0.0
      %516 = vmatmul.mubr.f32.gmra.mrb[0].mxu0 %v372
      %v517 = vpop.f32.mrb[0].mxu0
      %v518 = vadd.f32 0.0, %v517
      %v519 = vpop.f32.mrb[0].mxu0
      %v520 = vadd.f32 0.0, %v519
      %521 = vmatprep.mubr.f32.mxu0 0.0
      %522 = vmatmul.mubr.f32.gmra.mrb[0].mxu0 %v375
      %v523 = vpop.f32.mrb[0].mxu0
      %v524 = vadd.f32 0.0, %v523
      %v525 = vpop.f32.mrb[0].mxu0
      %v526 = vadd.f32 0.0, %v525
      %527 = vmatprep.mubr.f32.mxu0 0.0
      %528 = vmatmul.mubr.f32.gmra.mrb[0].mxu0 %v378
      %v529 = vpop.f32.mrb[0].mxu0
      %v530 = vadd.f32 0.0, %v529
      %v531 = vpop.f32.mrb[0].mxu0
      %v532 = vadd.f32 0.0, %v531
      %533 = vmatprep.mubr.f32.mxu0 0.0
      %534 = vmatmul.mubr.f32.gmra.mrb[0].mxu0 %v381
      %v535 = vpop.f32.mrb[0].mxu0
      %v536 = vadd.f32 0.0, %v535
      %v537 = vpop.f32.mrb[0].mxu0
      %v538 = vadd.f32 0.0, %v537
      %539 = vmatprep.mubr.f32.mxu0 0.0
      %540 = vmatmul.mubr.f32.gmra.mrb[0].mxu0 %v384
      %v541 = vpop.f32.mrb[0].mxu0
      %v542 = vadd.f32 0.0, %v541
      %v543 = vpop.f32.mrb[0].mxu0
      %v544 = vadd.f32 0.0, %v543
      %545 = vmatprep.mubr.f32.mxu0 0.0
      %546 = vmatmul.mubr.f32.gmra.mrb[0].mxu0 %v387
      %v547 = vpop.f32.mrb[0].mxu0
      %v548 = vadd.f32 0.0, %v547
      %v549 = vpop.f32.mrb[0].mxu0
      %v550 = vadd.f32 0.0, %v549
      %551 = vmatprep.mubr.f32.mxu0 0.0
      %552 = vmatmul.mubr.f32.gmra.mrb[0].mxu0 %v390
      %v553 = vpop.f32.mrb[0].mxu0
      %v554 = vadd.f32 0.0, %v553
      %v555 = vpop.f32.mrb[0].mxu0
      %v556 = vadd.f32 0.0, %v555
      %557 = vdwg.mxu0
      %559 = vset.pattern.permute.xlu0 0
      %560 = vperm.xlu0 %559, %v325
      %v561 = vpop.permute.xlu0 %560
      %564 = vset.pattern.permute.xlu0 0
      %565 = vperm.xlu0 %564, %v326
      %v566 = vpop.permute.xlu0 %565
      %569 = vset.pattern.permute.xlu0 0
      %570 = vperm.xlu0 %569, %v327
      %v571 = vpop.permute.xlu0 %570
      %574 = vset.pattern.permute.xlu0 0
      %575 = vperm.xlu0 %574, %v328
      %v576 = vpop.permute.xlu0 %575
      %579 = vset.pattern.permute.xlu0 0
      %580 = vperm.xlu0 %579, %v329
      %v581 = vpop.permute.xlu0 %580
      %584 = vset.pattern.permute.xlu0 0
      %585 = vperm.xlu0 %584, %v330
      %v586 = vpop.permute.xlu0 %585
      %589 = vset.pattern.permute.xlu0 0
      %590 = vperm.xlu0 %589, %v331
      %v591 = vpop.permute.xlu0 %590
      %594 = vset.pattern.permute.xlu0 0
      %595 = vperm.xlu0 %594, %v332
      %v596 = vpop.permute.xlu0 %595
      %599 = vset.pattern.permute.xlu0 0
      %600 = vperm.xlu0 %599, %v333
      %v601 = vpop.permute.xlu0 %600
      %604 = vset.pattern.permute.xlu0 0
      %605 = vperm.xlu0 %604, %v334
      %v606 = vpop.permute.xlu0 %605
      %609 = vset.pattern.permute.xlu0 0
      %610 = vperm.xlu0 %609, %v335
      %v611 = vpop.permute.xlu0 %610
      %614 = vset.pattern.permute.xlu0 0
      %615 = vperm.xlu0 %614, %v336
      %v616 = vpop.permute.xlu0 %615
      %619 = vset.pattern.permute.xlu0 0
      %620 = vperm.xlu0 %619, %v337
      %v621 = vpop.permute.xlu0 %620
      %624 = vset.pattern.permute.xlu0 0
      %625 = vperm.xlu0 %624, %v338
      %v626 = vpop.permute.xlu0 %625
      %629 = vset.pattern.permute.xlu0 0
      %630 = vperm.xlu0 %629, %v339
      %v631 = vpop.permute.xlu0 %630
      %634 = vset.pattern.permute.xlu0 0
      %635 = vperm.xlu0 %634, %v340
      %v636 = vpop.permute.xlu0 %635
      %v638 = vsub.f32 %v561, %v464
      %v639 = vsub.f32 %v561, %v466
      %v640 = vsub.f32 %v566, %v470
      %v641 = vsub.f32 %v566, %v472
      %v642 = vsub.f32 %v571, %v476
      %v643 = vsub.f32 %v571, %v478
      %v644 = vsub.f32 %v576, %v482
      %v645 = vsub.f32 %v576, %v484
      %v646 = vsub.f32 %v581, %v488
      %v647 = vsub.f32 %v581, %v490
      %v648 = vsub.f32 %v586, %v494
      %v649 = vsub.f32 %v586, %v496
      %v650 = vsub.f32 %v591, %v500
      %v651 = vsub.f32 %v591, %v502
      %v652 = vsub.f32 %v596, %v506
      %v653 = vsub.f32 %v596, %v508
      %v654 = vsub.f32 %v601, %v512
      %v655 = vsub.f32 %v601, %v514
      %v656 = vsub.f32 %v606, %v518
      %v657 = vsub.f32 %v606, %v520
      %v658 = vsub.f32 %v611, %v524
      %v659 = vsub.f32 %v611, %v526
      %v660 = vsub.f32 %v616, %v530
      %v661 = vsub.f32 %v616, %v532
      %v662 = vsub.f32 %v621, %v536
      %v663 = vsub.f32 %v621, %v538
      %v664 = vsub.f32 %v626, %v542
      %v665 = vsub.f32 %v626, %v544
      %v666 = vsub.f32 %v631, %v548
      %v667 = vsub.f32 %v631, %v550
      %v668 = vsub.f32 %v636, %v554
      %v669 = vsub.f32 %v636, %v556
      %v670 = vmin.f32 %v638, %v642
      %v671 = vmin.f32 %v640, %v644
      %v672 = vmin.f32 %v670, %v646
      %v673 = vmin.f32 %v671, %v648
      %v674 = vmin.f32 %v672, %v650
      %v675 = vmin.f32 %v673, %v652
      %v676 = vmin.f32 %v674, %v654
      %v677 = vmin.f32 %v675, %v656
      %v678 = vmin.f32 %v676, %v658
      %v679 = vmin.f32 %v677, %v660
      %v680 = vmin.f32 %v678, %v662
      %v681 = vmin.f32 %v679, %v664
      %v682 = vmin.f32 %v680, %v666
      %v683 = vmin.f32 %v681, %v668
      %v684 = vmin.f32 %v682, %v683
      %v685 = vrot.slane %v684, 4
      %v686 = vmin.f32 %v684, %v685
      %v687 = vrot.slane %v686, 2
      %v688 = vmin.f32 %v686, %v687
      %v689 = vrot.slane %v688, 1
      %v690 = vmin.f32 %v688, %v689
      %v691 = vmin.f32 %v639, %v643
      %v692 = vmin.f32 %v641, %v645
      %v693 = vmin.f32 %v691, %v647
      %v694 = vmin.f32 %v692, %v649
      %v695 = vmin.f32 %v693, %v651
      %v696 = vmin.f32 %v694, %v653
      %v697 = vmin.f32 %v695, %v655
      %v698 = vmin.f32 %v696, %v657
      %v699 = vmin.f32 %v697, %v659
      %v700 = vmin.f32 %v698, %v661
      %v701 = vmin.f32 %v699, %v663
      %v702 = vmin.f32 %v700, %v665
      %v703 = vmin.f32 %v701, %v667
      %v704 = vmin.f32 %v702, %v669
      %v705 = vmin.f32 %v703, %v704
      %v706 = vrot.slane %v705, 4
      %v707 = vmin.f32 %v705, %v706
      %v708 = vrot.slane %v707, 2
      %v709 = vmin.f32 %v707, %v708
      %v710 = vrot.slane %v709, 1
      %v711 = vmin.f32 %v709, %v710
      %v712 = vlaneseq
      %v713 = vshrl.u32 %v712, 7
      %v714 = vadd.s32 %v713, 8
      %v715 = vadd.s32 %v713, 16
      %v716 = vadd.s32 %v713, 24
      %v717 = vadd.s32 %v713, 32
      %v718 = vadd.s32 %v713, 40
      %v719 = vadd.s32 %v713, 48
      %v720 = vadd.s32 %v713, 56
      %v721 = vadd.s32 %v713, 64
      %v722 = vadd.s32 %v713, 72
      %v723 = vadd.s32 %v713, 80
      %v724 = vadd.s32 %v713, 88
      %v725 = vadd.s32 %v713, 96
      %v726 = vadd.s32 %v713, 104
      %v727 = vadd.s32 %v713, 112
      %v728 = vadd.s32 %v713, 120
      %vm729 = vcmp.le.f32.partialorder %v638, %v690
      %vm730 = vcmp.le.f32.partialorder %v639, %v711
      %vm731 = vcmp.le.f32.partialorder %v640, %v690
      %vm732 = vcmp.le.f32.partialorder %v641, %v711
      %vm733 = vcmp.le.f32.partialorder %v642, %v690
      %vm734 = vcmp.le.f32.partialorder %v643, %v711
      %vm735 = vcmp.le.f32.partialorder %v644, %v690
      %vm736 = vcmp.le.f32.partialorder %v645, %v711
      %vm737 = vcmp.le.f32.partialorder %v646, %v690
      %vm738 = vcmp.le.f32.partialorder %v647, %v711
      %vm739 = vcmp.le.f32.partialorder %v648, %v690
      %vm740 = vcmp.le.f32.partialorder %v649, %v711
      %vm741 = vcmp.le.f32.partialorder %v650, %v690
      %vm742 = vcmp.le.f32.partialorder %v651, %v711
      %vm743 = vcmp.le.f32.partialorder %v652, %v690
      %vm744 = vcmp.le.f32.partialorder %v653, %v711
      %vm745 = vcmp.le.f32.partialorder %v654, %v690
      %vm746 = vcmp.le.f32.partialorder %v655, %v711
      %vm747 = vcmp.le.f32.partialorder %v656, %v690
      %vm748 = vcmp.le.f32.partialorder %v657, %v711
      %vm749 = vcmp.le.f32.partialorder %v658, %v690
      %vm750 = vcmp.le.f32.partialorder %v659, %v711
      %vm751 = vcmp.le.f32.partialorder %v660, %v690
      %vm752 = vcmp.le.f32.partialorder %v661, %v711
      %vm753 = vcmp.le.f32.partialorder %v662, %v690
      %vm754 = vcmp.le.f32.partialorder %v663, %v711
      %vm755 = vcmp.le.f32.partialorder %v664, %v690
      %vm756 = vcmp.le.f32.partialorder %v665, %v711
      %vm757 = vcmp.le.f32.partialorder %v666, %v690
      %vm758 = vcmp.le.f32.partialorder %v667, %v711
      %vm759 = vcmp.le.f32.partialorder %v668, %v690
      %vm760 = vcmp.le.f32.partialorder %v669, %v711
      %v761 = vsel %vm729, %v713, 128
      %v762 = vsel %vm730, %v713, 128
      %v763 = vsel %vm731, %v714, 128
      %v764 = vsel %vm732, %v714, 128
      %v765 = vsel %vm733, %v715, 128
      %v766 = vsel %vm734, %v715, 128
      %v767 = vsel %vm735, %v716, 128
      %v768 = vsel %vm736, %v716, 128
      %v769 = vsel %vm737, %v717, 128
      %v770 = vsel %vm738, %v717, 128
      %v771 = vsel %vm739, %v718, 128
      %v772 = vsel %vm740, %v718, 128
      %v773 = vsel %vm741, %v719, 128
      %v774 = vsel %vm742, %v719, 128
      %v775 = vsel %vm743, %v720, 128
      %v776 = vsel %vm744, %v720, 128
      %v777 = vsel %vm745, %v721, 128
      %v778 = vsel %vm746, %v721, 128
      %v779 = vsel %vm747, %v722, 128
      %v780 = vsel %vm748, %v722, 128
      %v781 = vsel %vm749, %v723, 128
      %v782 = vsel %vm750, %v723, 128
      %v783 = vsel %vm751, %v724, 128
      %v784 = vsel %vm752, %v724, 128
      %v785 = vsel %vm753, %v725, 128
      %v786 = vsel %vm754, %v725, 128
      %v787 = vsel %vm755, %v726, 128
      %v788 = vsel %vm756, %v726, 128
      %v789 = vsel %vm757, %v727, 128
      %v790 = vsel %vm758, %v727, 128
      %v791 = vsel %vm759, %v728, 128
      %v792 = vsel %vm760, %v728, 128
      %vm793 = vcmp.lt.s32.totalorder %v761, %v765
      %v794 = vsel %vm793, %v761, %v765
      %vm795 = vcmp.lt.s32.totalorder %v763, %v767
      %v796 = vsel %vm795, %v763, %v767
      %vm797 = vcmp.lt.s32.totalorder %v794, %v769
      %v798 = vsel %vm797, %v794, %v769
      %vm799 = vcmp.lt.s32.totalorder %v796, %v771
      %v800 = vsel %vm799, %v796, %v771
      %vm801 = vcmp.lt.s32.totalorder %v798, %v773
      %v802 = vsel %vm801, %v798, %v773
      %vm803 = vcmp.lt.s32.totalorder %v800, %v775
      %v804 = vsel %vm803, %v800, %v775
      %vm805 = vcmp.lt.s32.totalorder %v802, %v777
      %v806 = vsel %vm805, %v802, %v777
      %vm807 = vcmp.lt.s32.totalorder %v804, %v779
      %v808 = vsel %vm807, %v804, %v779
      %vm809 = vcmp.lt.s32.totalorder %v806, %v781
      %v810 = vsel %vm809, %v806, %v781
      %vm811 = vcmp.lt.s32.totalorder %v808, %v783
      %v812 = vsel %vm811, %v808, %v783
      %vm813 = vcmp.lt.s32.totalorder %v810, %v785
      %v814 = vsel %vm813, %v810, %v785
      %vm815 = vcmp.lt.s32.totalorder %v812, %v787
      %v816 = vsel %vm815, %v812, %v787
      %vm817 = vcmp.lt.s32.totalorder %v814, %v789
      %v818 = vsel %vm817, %v814, %v789
      %vm819 = vcmp.lt.s32.totalorder %v816, %v791
      %v820 = vsel %vm819, %v816, %v791
      %vm821 = vcmp.lt.s32.totalorder %v818, %v820
      %v822 = vsel %vm821, %v818, %v820
      %v823 = vrot.slane %v822, 4
      %vm824 = vcmp.lt.s32.totalorder %v822, %v823
      %v825 = vsel %vm824, %v822, %v823
      %v826 = vrot.slane %v825, 2
      %vm827 = vcmp.lt.s32.totalorder %v825, %v826
      %v828 = vsel %vm827, %v825, %v826
      %v829 = vrot.slane %v828, 1
      %vm830 = vcmp.lt.s32.totalorder %v828, %v829
      %v831 = vsel %vm830, %v828, %v829
      %vm832 = vcmp.lt.s32.totalorder %v762, %v766
      %v833 = vsel %vm832, %v762, %v766
      %vm834 = vcmp.lt.s32.totalorder %v764, %v768
      %v835 = vsel %vm834, %v764, %v768
      %vm836 = vcmp.lt.s32.totalorder %v833, %v770
      %v837 = vsel %vm836, %v833, %v770
      %vm838 = vcmp.lt.s32.totalorder %v835, %v772
      %v839 = vsel %vm838, %v835, %v772
      %vm840 = vcmp.lt.s32.totalorder %v837, %v774
      %v841 = vsel %vm840, %v837, %v774
      %vm842 = vcmp.lt.s32.totalorder %v839, %v776
      %v843 = vsel %vm842, %v839, %v776
      %vm844 = vcmp.lt.s32.totalorder %v841, %v778
      %v845 = vsel %vm844, %v841, %v778
      %vm846 = vcmp.lt.s32.totalorder %v843, %v780
      %v847 = vsel %vm846, %v843, %v780
      %vm848 = vcmp.lt.s32.totalorder %v845, %v782
      %v849 = vsel %vm848, %v845, %v782
      %vm850 = vcmp.lt.s32.totalorder %v847, %v784
      %v851 = vsel %vm850, %v847, %v784
      %vm852 = vcmp.lt.s32.totalorder %v849, %v786
      %v853 = vsel %vm852, %v849, %v786
      %vm854 = vcmp.lt.s32.totalorder %v851, %v788
      %v855 = vsel %vm854, %v851, %v788
      %vm856 = vcmp.lt.s32.totalorder %v853, %v790
      %v857 = vsel %vm856, %v853, %v790
      %vm858 = vcmp.lt.s32.totalorder %v855, %v792
      %v859 = vsel %vm858, %v855, %v792
      %vm860 = vcmp.lt.s32.totalorder %v857, %v859
      %v861 = vsel %vm860, %v857, %v859
      %v862 = vrot.slane %v861, 4
      %vm863 = vcmp.lt.s32.totalorder %v861, %v862
      %v864 = vsel %vm863, %v861, %v862
      %v865 = vrot.slane %v864, 2
      %vm866 = vcmp.lt.s32.totalorder %v864, %v865
      %v867 = vsel %vm866, %v864, %v865
      %v868 = vrot.slane %v867, 1
      %vm869 = vcmp.lt.s32.totalorder %v867, %v868
      %v870 = vsel %vm869, %v867, %v868
      %vm871 = vcmp.eq.s32.totalorder %v713, %v831
      %vm872 = vcmp.eq.s32.totalorder %v713, %v870
      %vm873 = vcmp.eq.s32.totalorder %v714, %v831
      %vm874 = vcmp.eq.s32.totalorder %v714, %v870
      %vm875 = vcmp.eq.s32.totalorder %v715, %v831
      %vm876 = vcmp.eq.s32.totalorder %v715, %v870
      %vm877 = vcmp.eq.s32.totalorder %v716, %v831
      %vm878 = vcmp.eq.s32.totalorder %v716, %v870
      %vm879 = vcmp.eq.s32.totalorder %v717, %v831
      %vm880 = vcmp.eq.s32.totalorder %v717, %v870
      %vm881 = vcmp.eq.s32.totalorder %v718, %v831
      %vm882 = vcmp.eq.s32.totalorder %v718, %v870
      %vm883 = vcmp.eq.s32.totalorder %v719, %v831
      %vm884 = vcmp.eq.s32.totalorder %v719, %v870
      %vm885 = vcmp.eq.s32.totalorder %v720, %v831
      %vm886 = vcmp.eq.s32.totalorder %v720, %v870
      %vm887 = vcmp.eq.s32.totalorder %v721, %v831
      %vm888 = vcmp.eq.s32.totalorder %v721, %v870
      %vm889 = vcmp.eq.s32.totalorder %v722, %v831
      %vm890 = vcmp.eq.s32.totalorder %v722, %v870
      %vm891 = vcmp.eq.s32.totalorder %v723, %v831
      %vm892 = vcmp.eq.s32.totalorder %v723, %v870
      %vm893 = vcmp.eq.s32.totalorder %v724, %v831
      %vm894 = vcmp.eq.s32.totalorder %v724, %v870
      %vm895 = vcmp.eq.s32.totalorder %v725, %v831
      %vm896 = vcmp.eq.s32.totalorder %v725, %v870
      %vm897 = vcmp.eq.s32.totalorder %v726, %v831
      %vm898 = vcmp.eq.s32.totalorder %v726, %v870
      %vm899 = vcmp.eq.s32.totalorder %v727, %v831
      %vm900 = vcmp.eq.s32.totalorder %v727, %v870
      %vm901 = vcmp.eq.s32.totalorder %v728, %v831
      %vm902 = vcmp.eq.s32.totalorder %v728, %v870
      %v903 = vsel %vm871, 1, 0
      %v904 = vsel %vm872, 1, 0
      %v905 = vsel %vm873, 1, 0
      %v906 = vsel %vm874, 1, 0
      %v907 = vsel %vm875, 1, 0
      %v908 = vsel %vm876, 1, 0
      %v909 = vsel %vm877, 1, 0
      %v910 = vsel %vm878, 1, 0
      %v911 = vsel %vm879, 1, 0
      %v912 = vsel %vm880, 1, 0
      %v913 = vsel %vm881, 1, 0
      %v914 = vsel %vm882, 1, 0
      %v915 = vsel %vm883, 1, 0
      %v916 = vsel %vm884, 1, 0
      %v917 = vsel %vm885, 1, 0
      %v918 = vsel %vm886, 1, 0
      %v919 = vsel %vm887, 1, 0
      %v920 = vsel %vm888, 1, 0
      %v921 = vsel %vm889, 1, 0
      %v922 = vsel %vm890, 1, 0
      %v923 = vsel %vm891, 1, 0
      %v924 = vsel %vm892, 1, 0
      %v925 = vsel %vm893, 1, 0
      %v926 = vsel %vm894, 1, 0
      %v927 = vsel %vm895, 1, 0
      %v928 = vsel %vm896, 1, 0
      %v929 = vsel %vm897, 1, 0
      %v930 = vsel %vm898, 1, 0
      %v931 = vsel %vm899, 1, 0
      %v932 = vsel %vm900, 1, 0
      %v933 = vsel %vm901, 1, 0
      %v934 = vsel %vm902, 1, 0
      %v935 = vcvt.s32.f32 %v903
      %v936 = vcvt.s32.f32 %v904
      %v937 = vcvt.s32.f32 %v905
      %v938 = vcvt.s32.f32 %v906
      %v939 = vcvt.s32.f32 %v907
      %v940 = vcvt.s32.f32 %v908
      %v941 = vcvt.s32.f32 %v909
      %v942 = vcvt.s32.f32 %v910
      %v943 = vcvt.s32.f32 %v911
      %v944 = vcvt.s32.f32 %v912
      %v945 = vcvt.s32.f32 %v913
      %v946 = vcvt.s32.f32 %v914
      %v947 = vcvt.s32.f32 %v915
      %v948 = vcvt.s32.f32 %v916
      %v949 = vcvt.s32.f32 %v917
      %v950 = vcvt.s32.f32 %v918
      %v951 = vcvt.s32.f32 %v919
      %v952 = vcvt.s32.f32 %v920
      %v953 = vcvt.s32.f32 %v921
      %v954 = vcvt.s32.f32 %v922
      %v955 = vcvt.s32.f32 %v923
      %v956 = vcvt.s32.f32 %v924
      %v957 = vcvt.s32.f32 %v925
      %v958 = vcvt.s32.f32 %v926
      %v959 = vcvt.s32.f32 %v927
      %v960 = vcvt.s32.f32 %v928
      %v961 = vcvt.s32.f32 %v929
      %v962 = vcvt.s32.f32 %v930
      %v963 = vcvt.s32.f32 %v931
      %v964 = vcvt.s32.f32 %v932
      %v965 = vcvt.s32.f32 %v933
      %v966 = vcvt.s32.f32 %v934
      %967 = vxpose.xlu0.b32.start [1/16] %v309, 128
      %968 = vxpose.xlu0.b32.cont [2/16] %v310, 128
      %969 = vxpose.xlu0.b32.cont [3/16] %v311, 128
      %970 = vxpose.xlu0.b32.cont [4/16] %v312, 128
      %971 = vxpose.xlu0.b32.cont [5/16] %v313, 128
      %972 = vxpose.xlu0.b32.cont [6/16] %v314, 128
      %973 = vxpose.xlu0.b32.cont [7/16] %v315, 128
      %974 = vxpose.xlu0.b32.cont [8/16] %v316, 128
      %975 = vxpose.xlu0.b32.cont [9/16] %v317, 128
      %976 = vxpose.xlu0.b32.cont [10/16] %v318, 128
      %977 = vxpose.xlu0.b32.cont [11/16] %v319, 128
      %978 = vxpose.xlu0.b32.cont [12/16] %v320, 128
      %979 = vxpose.xlu0.b32.cont [13/16] %v321, 128
      %980 = vxpose.xlu0.b32.cont [14/16] %v322, 128
      %981 = vxpose.xlu0.b32.cont [15/16] %v323, 128
      %982 = vxpose.xlu0.b32.end [16/16] %v324, 128
      %v983 = vpop.trf.xlu0
      %v984 = vpop.trf.xlu0
      %v985 = vpop.trf.xlu0
      %v986 = vpop.trf.xlu0
      %v987 = vpop.trf.xlu0
      %v988 = vpop.trf.xlu0
      %v989 = vpop.trf.xlu0
      %v990 = vpop.trf.xlu0
      %v991 = vpop.trf.xlu0
      %v992 = vpop.trf.xlu0
      %v993 = vpop.trf.xlu0
      %v994 = vpop.trf.xlu0
      %v995 = vpop.trf.xlu0
      %v996 = vpop.trf.xlu0
      %v997 = vpop.trf.xlu0
      %v998 = vpop.trf.xlu0
      %999 = vmatprep.subr.mxu0 %v936
      %1000 = vmatpush1.msra.mxu0 %v935
      %1001 = vmatprep.subr.mxu0 %v938
      %1002 = vmatpush1.msra.mxu0 %v937
      %1003 = vmatprep.subr.mxu0 %v940
      %1004 = vmatpush1.msra.mxu0 %v939
      %1005 = vmatprep.subr.mxu0 %v942
      %1006 = vmatpush1.msra.mxu0 %v941
      %1007 = vmatprep.subr.mxu0 %v944
      %1008 = vmatpush1.msra.mxu0 %v943
      %1009 = vmatprep.subr.mxu0 %v946
      %1010 = vmatpush1.msra.mxu0 %v945
      %1011 = vmatprep.subr.mxu0 %v948
      %1012 = vmatpush1.msra.mxu0 %v947
      %1013 = vmatprep.subr.mxu0 %v950
      %1014 = vmatpush1.msra.mxu0 %v949
      %1015 = vmatprep.subr.mxu0 %v952
      %1016 = vmatpush1.msra.mxu0 %v951
      %1017 = vmatprep.subr.mxu0 %v954
      %1018 = vmatpush1.msra.mxu0 %v953
      %1019 = vmatprep.subr.mxu0 %v956
      %1020 = vmatpush1.msra.mxu0 %v955
      %1021 = vmatprep.subr.mxu0 %v958
      %1022 = vmatpush1.msra.mxu0 %v957
      %1023 = vmatprep.subr.mxu0 %v960
      %1024 = vmatpush1.msra.mxu0 %v959
      %1025 = vmatprep.subr.mxu0 %v962
      %1026 = vmatpush1.msra.mxu0 %v961
      %1027 = vmatprep.subr.mxu0 %v964
      %1028 = vmatpush1.msra.mxu0 %v963
      %1029 = vmatprep.subr.mxu0 %v966
      %1030 = vmatpush1.msra.mxu0 %v965
      %1031 = vmatprep.subr.mxu0 0.0
      %1032 = vmatpush1.msra.mxu0 0.0
      %1033 = vmatprep.subr.mxu0 0.0
      %1034 = vmatpush1.msra.mxu0 0.0
      %1035 = vmatprep.subr.mxu0 0.0
      %1036 = vmatpush1.msra.mxu0 0.0
      %1037 = vmatprep.subr.mxu0 0.0
      %1038 = vmatpush1.msra.mxu0 0.0
      %1039 = vmatprep.subr.mxu0 0.0
      %1040 = vmatpush1.msra.mxu0 0.0
      %1041 = vmatprep.subr.mxu0 0.0
      %1042 = vmatpush1.msra.mxu0 0.0
      %1043 = vmatprep.subr.mxu0 0.0
      %1044 = vmatpush1.msra.mxu0 0.0
      %1045 = vmatprep.subr.mxu0 0.0
      %1046 = vmatpush1.msra.mxu0 0.0
      %1047 = vmatprep.subr.mxu0 0.0
      %1048 = vmatpush1.msra.mxu0 0.0
      %1049 = vmatprep.subr.mxu0 0.0
      %1050 = vmatpush1.msra.mxu0 0.0
      %1051 = vmatprep.subr.mxu0 0.0
      %1052 = vmatpush1.msra.mxu0 0.0
      %1053 = vmatprep.subr.mxu0 0.0
      %1054 = vmatpush1.msra.mxu0 0.0
      %1055 = vmatprep.subr.mxu0 0.0
      %1056 = vmatpush1.msra.mxu0 0.0
      %1057 = vmatprep.subr.mxu0 0.0
      %1058 = vmatpush1.msra.mxu0 0.0
      %1059 = vmatprep.subr.mxu0 0.0
      %1060 = vmatpush1.msra.mxu0 0.0
      %1061 = vmatprep.subr.mxu0 0.0
      %1062 = vmatpush1.msra.mxu0 0.0
      %1063 = vmatprep.mubr.f32.mxu0 0.0
      %1064 = vmatmul.mubr.f32.gmra.mrb[0].mxu0 %v983
      %v1065 = vpop.f32.mrb[0].mxu0
      %v1066 = vadd.f32 0.0, %v1065
      %v1067 = vpop.f32.mrb[0].mxu0
      %v1068 = vadd.f32 0.0, %v1067
      %1069 = vdwg.mxu0
      %v1072 = vcombine.low %v1066, %v1068
      %1074 = vst [vmem:[%s288] sm:$0xff] %v1072
      %v1075 = vcombine.low %v831, %v870
      %v1077 = vunpack.c.l.s4 1966171168
      %v1078 = vunpack.c.0.s8 %v1077
      %v1079 = vlaneseq
      %v1080 = vshrl.u32 %v1079, 7
      %v1081 = vsub.s32 %v1078, %v1080
      %v1082 = vrot.slane %v1075, %v1081
      %v1084 = vunpack.c.l.s4 1966171168
      %v1085 = vunpack.c.0.s8 %v1084
      %v1086 = vlaneseq
      %v1087 = vshrl.u32 %v1086, 7
      %v1088 = vsub.s32 %v1085, %v1087
      %v1089 = vrot.slane %v1082, %v1088
      %v1090 = vlaneseq
      %vm1091 = vcmp.ge.s32.totalorder %v1090, 0
      %vm1092 = vcmp.lt.s32.totalorder %v1090, 256
      %vm1093 = vmand %vm1091, %vm1092
      %1094 = vst.msk [vmem:[%s297] sm:$0x3] %vm1093, %v1089
      %1095 = vmatprep.subr.mxu0 0.0
      %1096 = vmatpush1.msra.mxu0 1.0
      %1097 = vmatprep.subr.mxu0 0.0
      %1098 = vmatpush1.msra.mxu0 1.0
      %1099 = vmatprep.subr.mxu0 0.0
      %1100 = vmatpush1.msra.mxu0 1.0
      %1101 = vmatprep.subr.mxu0 0.0
      %1102 = vmatpush1.msra.mxu0 1.0
      %1103 = vmatprep.subr.mxu0 0.0
      %1104 = vmatpush1.msra.mxu0 1.0
      %1105 = vmatprep.subr.mxu0 0.0
      %1106 = vmatpush1.msra.mxu0 1.0
      %1107 = vmatprep.subr.mxu0 0.0
      %1108 = vmatpush1.msra.mxu0 1.0
      %1109 = vmatprep.subr.mxu0 0.0
      %1110 = vmatpush1.msra.mxu0 1.0
      %1111 = vmatprep.subr.mxu0 0.0
      %1112 = vmatpush1.msra.mxu0 1.0
      %1113 = vmatprep.subr.mxu0 0.0
      %1114 = vmatpush1.msra.mxu0 1.0
      %1115 = vmatprep.subr.mxu0 0.0
      %1116 = vmatpush1.msra.mxu0 1.0
      %1117 = vmatprep.subr.mxu0 0.0
      %1118 = vmatpush1.msra.mxu0 1.0
      %1119 = vmatprep.subr.mxu0 0.0
      %1120 = vmatpush1.msra.mxu0 1.0
      %1121 = vmatprep.subr.mxu0 0.0
      %1122 = vmatpush1.msra.mxu0 1.0
      %1123 = vmatprep.subr.mxu0 0.0
      %1124 = vmatpush1.msra.mxu0 1.0
      %1125 = vmatprep.subr.mxu0 0.0
      %1126 = vmatpush1.msra.mxu0 1.0
      %1127 = vmatprep.subr.mxu0 0.0
      %1128 = vmatpush1.msra.mxu0 1.0
      %1129 = vmatprep.subr.mxu0 0.0
      %1130 = vmatpush1.msra.mxu0 1.0
      %1131 = vmatprep.subr.mxu0 0.0
      %1132 = vmatpush1.msra.mxu0 1.0
      %1133 = vmatprep.subr.mxu0 0.0
      %1134 = vmatpush1.msra.mxu0 1.0
      %1135 = vmatprep.subr.mxu0 0.0
      %1136 = vmatpush1.msra.mxu0 1.0
      %1137 = vmatprep.subr.mxu0 0.0
      %1138 = vmatpush1.msra.mxu0 1.0
      %1139 = vmatprep.subr.mxu0 0.0
      %1140 = vmatpush1.msra.mxu0 1.0
      %1141 = vmatprep.subr.mxu0 0.0
      %1142 = vmatpush1.msra.mxu0 1.0
      %1143 = vmatprep.subr.mxu0 0.0
      %1144 = vmatpush1.msra.mxu0 1.0
      %1145 = vmatprep.subr.mxu0 0.0
      %1146 = vmatpush1.msra.mxu0 1.0
      %1147 = vmatprep.subr.mxu0 0.0
      %1148 = vmatpush1.msra.mxu0 1.0
      %1149 = vmatprep.subr.mxu0 0.0
      %1150 = vmatpush1.msra.mxu0 1.0
      %1151 = vmatprep.subr.mxu0 0.0
      %1152 = vmatpush1.msra.mxu0 1.0
      %1153 = vmatprep.subr.mxu0 0.0
      %1154 = vmatpush1.msra.mxu0 1.0
      %1155 = vmatprep.subr.mxu0 0.0
      %1156 = vmatpush1.msra.mxu0 1.0
      %1157 = vmatprep.subr.mxu0 0.0
      %1158 = vmatpush1.msra.mxu0 1.0
      %1159 = vmatprep.mubr.f32.mxu0 %v936
      %1160 = vmatmul.mubr.f32.gmra.mrb[0].mxu0 %v935
      %v1161 = vpop.f32.mrb[0].mxu0
      %v1162 = vadd.f32 0.0, %v1161
      %v1163 = vpop.f32.mrb[0].mxu0
      %1164 = vmatprep.mubr.f32.mxu0 %v938
      %1165 = vmatmul.mubr.f32.gmra.mrb[0].mxu0 %v937
      %v1166 = vpop.f32.mrb[0].mxu0
      %v1167 = vadd.f32 0.0, %v1166
      %v1168 = vpop.f32.mrb[0].mxu0
      %1169 = vmatprep.mubr.f32.mxu0 %v940
      %1170 = vmatmul.mubr.f32.gmra.mrb[0].mxu0 %v939
      %v1171 = vpop.f32.mrb[0].mxu0
      %v1172 = vadd.f32 0.0, %v1171
      %v1173 = vpop.f32.mrb[0].mxu0
      %1174 = vmatprep.mubr.f32.mxu0 %v942
      %1175 = vmatmul.mubr.f32.gmra.mrb[0].mxu0 %v941
      %v1176 = vpop.f32.mrb[0].mxu0
      %v1177 = vadd.f32 0.0, %v1176
      %v1178 = vpop.f32.mrb[0].mxu0
      %1179 = vmatprep.mubr.f32.mxu0 %v944
      %1180 = vmatmul.mubr.f32.gmra.mrb[0].mxu0 %v943
      %v1181 = vpop.f32.mrb[0].mxu0
      %v1182 = vadd.f32 0.0, %v1181
      %v1183 = vpop.f32.mrb[0].mxu0
      %1184 = vmatprep.mubr.f32.mxu0 %v946
      %1185 = vmatmul.mubr.f32.gmra.mrb[0].mxu0 %v945
      %v1186 = vpop.f32.mrb[0].mxu0
      %v1187 = vadd.f32 0.0, %v1186
      %v1188 = vpop.f32.mrb[0].mxu0
      %1189 = vmatprep.mubr.f32.mxu0 %v948
      %1190 = vmatmul.mubr.f32.gmra.mrb[0].mxu0 %v947
      %v1191 = vpop.f32.mrb[0].mxu0
      %v1192 = vadd.f32 0.0, %v1191
      %v1193 = vpop.f32.mrb[0].mxu0
      %1194 = vmatprep.mubr.f32.mxu0 %v950
      %1195 = vmatmul.mubr.f32.gmra.mrb[0].mxu0 %v949
      %v1196 = vpop.f32.mrb[0].mxu0
      %v1197 = vadd.f32 0.0, %v1196
      %v1198 = vpop.f32.mrb[0].mxu0
      %1199 = vmatprep.mubr.f32.mxu0 %v952
      %1200 = vmatmul.mubr.f32.gmra.mrb[0].mxu0 %v951
      %v1201 = vpop.f32.mrb[0].mxu0
      %v1202 = vadd.f32 0.0, %v1201
      %v1203 = vpop.f32.mrb[0].mxu0
      %1204 = vmatprep.mubr.f32.mxu0 %v954
      %1205 = vmatmul.mubr.f32.gmra.mrb[0].mxu0 %v953
      %v1206 = vpop.f32.mrb[0].mxu0
      %v1207 = vadd.f32 0.0, %v1206
      %v1208 = vpop.f32.mrb[0].mxu0
      %1209 = vmatprep.mubr.f32.mxu0 %v956
      %1210 = vmatmul.mubr.f32.gmra.mrb[0].mxu0 %v955
      %v1211 = vpop.f32.mrb[0].mxu0
      %v1212 = vadd.f32 0.0, %v1211
      %v1213 = vpop.f32.mrb[0].mxu0
      %1214 = vmatprep.mubr.f32.mxu0 %v958
      %1215 = vmatmul.mubr.f32.gmra.mrb[0].mxu0 %v957
      %v1216 = vpop.f32.mrb[0].mxu0
      %v1217 = vadd.f32 0.0, %v1216
      %v1218 = vpop.f32.mrb[0].mxu0
      %1219 = vmatprep.mubr.f32.mxu0 %v960
      %1220 = vmatmul.mubr.f32.gmra.mrb[0].mxu0 %v959
      %v1221 = vpop.f32.mrb[0].mxu0
      %v1222 = vadd.f32 0.0, %v1221
      %v1223 = vpop.f32.mrb[0].mxu0
      %1224 = vmatprep.mubr.f32.mxu0 %v962
      %1225 = vmatmul.mubr.f32.gmra.mrb[0].mxu0 %v961
      %v1226 = vpop.f32.mrb[0].mxu0
      %v1227 = vadd.f32 0.0, %v1226
      %v1228 = vpop.f32.mrb[0].mxu0
      %1229 = vmatprep.mubr.f32.mxu0 %v964
      %1230 = vmatmul.mubr.f32.gmra.mrb[0].mxu0 %v963
      %v1231 = vpop.f32.mrb[0].mxu0
      %v1232 = vadd.f32 0.0, %v1231
      %v1233 = vpop.f32.mrb[0].mxu0
      %1234 = vmatprep.mubr.f32.mxu0 %v966
      %1235 = vmatmul.mubr.f32.gmra.mrb[0].mxu0 %v965
      %v1236 = vpop.f32.mrb[0].mxu0
      %v1237 = vadd.f32 0.0, %v1236
      %v1238 = vpop.f32.mrb[0].mxu0
      %1239 = vdwg.mxu0
      %vm1240 = vcmask 7168
      %1241 = vst.msk [vmem:[%s307] sm:$0xff] %vm1240, %v1162
      %1242 = vst.msk [vmem:[%s307 + $0x8] sm:$0xff] %vm1240, %v1167
      %1243 = vst.msk [vmem:[%s307 + $0x10] sm:$0xff] %vm1240, %v1172
      %1244 = vst.msk [vmem:[%s307 + $0x18] sm:$0xff] %vm1240, %v1177
      %1245 = vst.msk [vmem:[%s307 + $0x20] sm:$0xff] %vm1240, %v1182
      %1246 = vst.msk [vmem:[%s307 + $0x28] sm:$0xff] %vm1240, %v1187
      %1247 = vst.msk [vmem:[%s307 + $0x30] sm:$0xff] %vm1240, %v1192
      %1248 = vst.msk [vmem:[%s307 + $0x38] sm:$0xff] %vm1240, %v1197
      %1249 = vst.msk [vmem:[%s307 + $0x40] sm:$0xff] %vm1240, %v1202
      %1250 = vst.msk [vmem:[%s307 + $0x48] sm:$0xff] %vm1240, %v1207
      %1251 = vst.msk [vmem:[%s307 + $0x50] sm:$0xff] %vm1240, %v1212
      %1252 = vst.msk [vmem:[%s307 + $0x58] sm:$0xff] %vm1240, %v1217
      %1253 = vst.msk [vmem:[%s307 + $0x60] sm:$0xff] %vm1240, %v1222
      %1254 = vst.msk [vmem:[%s307 + $0x68] sm:$0xff] %vm1240, %v1227
      %1255 = vst.msk [vmem:[%s307 + $0x70] sm:$0xff] %vm1240, %v1232
      %1256 = vst.msk [vmem:[%s307 + $0x78] sm:$0xff] %vm1240, %v1237
      %s1257 = smul.u32 2, %s22
      %p1258 = scmp.lt.s32.totalorder %s21, 1
      %s1259 = scalar_select %p1258, %s21, 1
      %p1260 = scmp.lt.s32.totalorder %s1257, 1
      %s1261 = scalar_select %p1260, %s1257, 1
      %s1262 = smul.addr %s1259, 2
      %s1263 = sadd.s32 %s1261, %s1262
      %s1264 = smul.addr %s1263, 4
      %s1265 = scalar_lea.vmem %s3, %s1264
      %s1266 = smul.u32 2, %s22
      %p1267 = scmp.lt.s32.totalorder %s21, 1
      %s1268 = scalar_select %p1267, %s21, 1
      %p1269 = scmp.lt.s32.totalorder %s1266, 1
      %s1270 = scalar_select %p1269, %s1266, 1
      %s1271 = smul.addr %s1268, 2
      %s1272 = sadd.s32 %s1270, %s1271
      %s1273 = scalar_lea.vmem %s4, %s1272
      %p1274 = scmp.lt.s32.totalorder %s21, 1
      %s1275 = scalar_select %p1274, %s21, 1
      %p1276 = scmp.lt.s32.totalorder %s22, 0
      %s1277 = scalar_select %p1276, %s22, 0
      %s1278 = smul.addr %s1277, 16
      %s1279 = smul.addr %s1275, 16
      %s1280 = sadd.s32 %s1278, %s1279
      %s1281 = smul.addr %s1280, 8
      %s1282 = scalar_lea.vmem %s5, %s1281
      // Predicated region
      $region33: #{ema_vector_quantizer_forward.1} parent=31 // pred_check
        %p1283 = pneg %p119
      $region34: #{ema_vector_quantizer_forward.1} parent=31 // pred_check_branch
        %1285 = sbr.rel (%p1283) target = $region36
      $region35: #{ema_vector_quantizer_forward.1} parent=31 // pred_region
        %s1286 = smul.u32 2, %s22
      $region36: #{ema_vector_quantizer_forward.1} parent=31 // pred_fallthru
        _
      // Predicated region
      $region37: #{ema_vector_quantizer_forward.1} parent=31 // pred_check
        %p1287 = pneg %p147
      $region38: #{ema_vector_quantizer_forward.1} parent=31 // pred_check_branch
        %1289 = sbr.rel (%p1287) target = $region40
      $region39: #{ema_vector_quantizer_forward.1} parent=31 // pred_region
        %s1290 = smul.u32 2, %s22
      $region40: #{ema_vector_quantizer_forward.1} parent=31 // pred_fallthru
        _
      // Predicated region
      $region41: #{ema_vector_quantizer_forward.1} parent=31 // pred_check
        %p1291 = pneg %p175
      $region42: #{ema_vector_quantizer_forward.1} parent=31 // pred_check_branch
        %1293 = sbr.rel (%p1291) target = $region44
      $region43: #{ema_vector_quantizer_forward.1} parent=31 // pred_region
        _
      $region44: #{ema_vector_quantizer_forward.1} parent=31 // pred_fallthru
        _
    $region32: #{ema_vector_quantizer_forward.1} parent=5 // pred_fallthru
      _
    %p1294 = scmp.le.s32.totalorder 2, %s12
    // Predicated region
    $region45: #{ema_vector_quantizer_forward.1} parent=5 // pred_check
      %p1295 = pneg %p1294
    $region46: #{ema_vector_quantizer_forward.1} parent=5 // pred_check_branch
      %1297 = sbr.rel (%p1295) target = $region48
    $region47: #{ema_vector_quantizer_forward.1} parent=5 // pred_region
      %s1298 = ssub.s32 %s12, 2
      // Predicated region
      $region49: #{ema_vector_quantizer_forward.1} parent=47 // pred_check
        %p1299 = pneg %p125
      $region50: #{ema_vector_quantizer_forward.1} parent=47 // pred_check_branch
        %1301 = sbr.rel (%p1299) target = $region52
      $region51: #{ema_vector_quantizer_forward.1} parent=47 // pred_region
        %s1302 = smul.u32 2, %s24
        %p1303 = scmp.lt.s32.totalorder %s23, 1
        %s1304 = scalar_select %p1303, %s23, 1
        %p1305 = scmp.lt.s32.totalorder %s1302, 1
        %s1306 = scalar_select %p1305, %s1302, 1
        %s1307 = smul.addr %s1304, 2
        %s1308 = sadd.s32 %s1306, %s1307
        %s1309 = smul.addr %s1308, 4
        %s1310 = scalar_lea.vmem %s3, %s1309
      $region52: #{ema_vector_quantizer_forward.1} parent=47 // pred_fallthru
        _
      // Predicated region
      $region53: #{ema_vector_quantizer_forward.1} parent=47 // pred_check
        %p1311 = pneg %p153
      $region54: #{ema_vector_quantizer_forward.1} parent=47 // pred_check_branch
        %1313 = sbr.rel (%p1311) target = $region56
      $region55: #{ema_vector_quantizer_forward.1} parent=47 // pred_region
        %s1314 = smul.u32 2, %s24
        %p1315 = scmp.lt.s32.totalorder %s23, 1
        %s1316 = scalar_select %p1315, %s23, 1
        %p1317 = scmp.lt.s32.totalorder %s1314, 1
        %s1318 = scalar_select %p1317, %s1314, 1
        %s1319 = smul.addr %s1316, 2
        %s1320 = sadd.s32 %s1318, %s1319
        %s1321 = scalar_lea.vmem %s4, %s1320
      $region56: #{ema_vector_quantizer_forward.1} parent=47 // pred_fallthru
        _
      // Predicated region
      $region57: #{ema_vector_quantizer_forward.1} parent=47 // pred_check
        %p1322 = pneg %p181
      $region58: #{ema_vector_quantizer_forward.1} parent=47 // pred_check_branch
        %1324 = sbr.rel (%p1322) target = $region60
      $region59: #{ema_vector_quantizer_forward.1} parent=47 // pred_region
        %p1325 = scmp.lt.s32.totalorder %s23, 1
        %s1326 = scalar_select %p1325, %s23, 1
        %p1327 = scmp.lt.s32.totalorder %s24, 0
        %s1328 = scalar_select %p1327, %s24, 0
        %s1329 = smul.addr %s1328, 16
        %s1330 = smul.addr %s1326, 16
        %s1331 = sadd.s32 %s1329, %s1330
        %s1332 = smul.addr %s1331, 8
        %s1333 = scalar_lea.vmem %s5, %s1332
      $region60: #{ema_vector_quantizer_forward.1} parent=47 // pred_fallthru
        _
    $region48: #{ema_vector_quantizer_forward.1} parent=5 // pred_fallthru
      _
  $region6: #{ema_vector_quantizer_forward.1} parent=0 // loop_footer
    %s16 = sadd.s32 1, %s12
  $region7: #{ema_vector_quantizer_forward.1} parent=0 // loop_footer_branch
    %11 = sbr.rel target = $region3
  $region8: #{ema_vector_quantizer_forward.1} parent=0 // loop_exit
    _

</llo_original>
